<compile_context>
chip_gen: v6e
topology: v6e:2x2x1
jax: 0.10.0
libtpu: 0.0.40
codegen_flags: <defaults>
</compile_context>

<pallas_src>
import math
import functools

import jax
import jax.numpy as jnp
from jax.experimental import pallas as pl
from jax.experimental.pallas import tpu as pltpu


def _memory_kernel(m_in_ref, qi_ref, m_out_ref, q_out_ref, out_ref, p_ref,
                   *, scale, vd):
    """One (batch-block, HW-tile) tile per grid step.

    m_in_ref : (bb, centers, C)
    qi_ref   : (bb, C, thw)
    m_out_ref: (bb, centers, vd)
    q_out_ref: (bb, Cq, thw)
    out_ref  : (bb, vd + Cq, thw)   fused [mem ; q_out] output
    p_ref    : (bb, centers, thw)   softmax weights output
    """
    m_in = m_in_ref[...]
    qi = qi_ref[...]
    mo = m_out_ref[...]

    # affinity logits: contract C  ->  (bb, centers, thw)
    logits = jax.lax.dot_general(
        m_in, qi,
        dimension_numbers=(((2,), (1,)), ((0,), (0,))),
        preferred_element_type=jnp.float32) * scale

    # softmax over the `centers` axis (torch softmax dim=1)
    mx = jnp.max(logits, axis=1, keepdims=True)
    ex = jnp.exp(logits - mx)
    denom = jnp.sum(ex, axis=1, keepdims=True)
    # EUP approximate reciprocal + one Newton-Raphson step (~f32-exact) keeps
    # the divide off the VALU while preserving tight numerics.
    inv = pl.reciprocal(denom, approx=True)
    inv = inv * (2.0 - denom * inv)
    p = ex * inv

    p_ref[...] = p.astype(p_ref.dtype)

    # mem = m_out^T @ p without materializing the transpose:
    # contract `centers` (dim 1 of both operands)  ->  (bb, vd, thw)
    # NOTE: kept in f32 to match the PyTorch reference; a bf16 operand cast
    # (f32 accumulate) is a further v6e-only throughput option.
    mem = jax.lax.dot_general(
        mo, p.astype(mo.dtype),
        dimension_numbers=(((1,), (1,)), ((0,), (0,))),
        preferred_element_type=jnp.float32)

    out_ref[:, :vd, :] = mem.astype(out_ref.dtype)
    out_ref[:, vd:, :] = q_out_ref[...].astype(out_ref.dtype)


def _pick_hw_tile(hwp):
    """Largest lane-dense HW tile (multiple of 128) that divides hwp."""
    if hwp <= 512:
        return hwp
    for cand in (512, 384, 256, 128):
        if hwp % cand == 0:
            return cand
    return 128  # hwp is always a multiple of 128


def _pick_batch_block(no, centers, C, vd, cq, thw, itemsize,
                      budget=8 * 1024 * 1024):
    """Largest batch block (dividing `no`) whose double-buffered blocks fit a
    conservative VMEM budget."""
    per_b = (centers * C + C * thw + centers * vd + cq * thw
             + (vd + cq) * thw + centers * thw) * itemsize * 2  # x2 dbl-buffer
    bb = max(1, min(no, budget // max(per_b, 1)))
    while no % bb:
        bb -= 1
    return bb


def memory_forward(m_in, m_out, q_in, q_out):
    """JAX wrapper matching Memory.forward(m_in, m_out, q_in, q_out)."""
    no, centers, C = m_in.shape
    _, _, vd = m_out.shape
    _, Cq, H, W = q_out.shape
    HW = H * W

    # glue: flatten spatial dims; pad HW up to a multiple of 128 so all kernel
    # loads/stores are lane-dense (padded columns are sliced off afterwards;
    # they softmax to 1/centers so no NaNs are produced).
    HWp = ((HW + 127) // 128) * 128
    qi = q_in.reshape(no, C, HW)
    qo = q_out.reshape(no, Cq, HW)
    if HWp != HW:
        pad = ((0, 0), (0, 0), (0, HWp - HW))
        qi = jnp.pad(qi, pad)
        qo = jnp.pad(qo, pad)

    out_dtype = q_in.dtype
    scale = 1.0 / math.sqrt(C)

    thw = _pick_hw_tile(HWp)
    bb = _pick_batch_block(no, centers, C, vd, Cq, thw,
                           jnp.dtype(out_dtype).itemsize)
    grid = (no // bb, HWp // thw)

    # TODO(synk): for very large `centers` (STM T*H*W in the thousands) add a
    # centers grid axis with online-softmax accumulators so blocks fit v7x's
    # 64 MiB VMEM.

    kernel = functools.partial(_memory_kernel, scale=scale, vd=vd)

    isz = jnp.dtype(out_dtype).itemsize
    bytes_accessed = int(
        m_in.size * m_in.dtype.itemsize + qi.size * qi.dtype.itemsize
        + m_out.size * m_out.dtype.itemsize + qo.size * qo.dtype.itemsize
        + no * (vd + Cq) * HWp * isz + no * centers * HWp * 4)
    cost = pl.CostEstimate(
        flops=2 * no * centers * HWp * (C + vd),
        transcendentals=no * centers * HWp,
        bytes_accessed=bytes_accessed)

    out_flat, p_flat = pl.pallas_call(
        kernel,
        out_shape=(
            jax.ShapeDtypeStruct((no, vd + Cq, HWp), out_dtype),
            jax.ShapeDtypeStruct((no, centers, HWp), jnp.float32),
        ),
        grid=grid,
        in_specs=[
            pl.BlockSpec((bb, centers, C), lambda b, h: (b, 0, 0)),
            pl.BlockSpec((bb, C, thw), lambda b, h: (b, 0, h)),
            pl.BlockSpec((bb, centers, vd), lambda b, h: (b, 0, 0)),
            pl.BlockSpec((bb, Cq, thw), lambda b, h: (b, 0, h)),
        ],
        out_specs=(
            pl.BlockSpec((bb, vd + Cq, thw), lambda b, h: (b, 0, h)),
            pl.BlockSpec((bb, centers, thw), lambda b, h: (b, 0, h)),
        ),
        compiler_params=pltpu.CompilerParams(
            dimension_semantics=("parallel", "parallel"),
            vmem_limit_bytes=32 * 1024 * 1024),
        cost_estimate=cost,
    )(m_in, qi, m_out, qo)

    mem_out = out_flat[..., :HW].reshape(no, vd + Cq, H, W)
    p = p_flat[..., :HW]
    return mem_out, p


def _reference(m_in, m_out, q_in, q_out):
    no, centers, C = m_in.shape
    _, _, vd = m_out.shape
    _, _, H, W = q_in.shape
    qi = q_in.reshape(no, C, H * W)
    p = jnp.einsum("ncd,ndk->nck", m_in, qi) / math.sqrt(C)
    p = jax.nn.softmax(p, axis=1)
    mem = jnp.einsum("nvc,nck->nvk", jnp.transpose(m_out, (0, 2, 1)), p)
    mem = mem.reshape(no, vd, H, W)
    return jnp.concatenate([mem, q_out], axis=1), p


if __name__ == "__main__":
    key = jax.random.PRNGKey(0)
    k1, k2, k3, k4 = jax.random.split(key, 4)

    # small shapes consistent with the forward pass
    no, centers, C = 2, 128, 32     # no objects, `centers` memory slots, key dim C
    vd = 32                         # memory value dim
    H = W = 8                       # query spatial size
    Cq = 32                         # q_out channels

    m_in = jax.random.normal(k1, (no, centers, C), dtype=jnp.float32)
    m_out = jax.random.normal(k2, (no, centers, vd), dtype=jnp.float32)
    q_in = jax.random.normal(k3, (no, C, H, W), dtype=jnp.float32)
    q_out = jax.random.normal(k4, (no, Cq, H, W), dtype=jnp.float32)

    mem_out, p = jax.jit(memory_forward)(m_in, m_out, q_in, q_out)
    jax.block_until_ready((mem_out, p))

    mem_out_ref, p_ref = _reference(m_in, m_out, q_in, q_out)
    assert mem_out.shape == (no, vd + Cq, H, W)
    assert p.shape == (no, centers, H * W)
    assert jnp.allclose(mem_out, mem_out_ref, atol=1e-4, rtol=1e-4)
    assert jnp.allclose(p, p_ref, atol=1e-5, rtol=1e-4)

    print("KERNEL_OK")
</pallas_src>

<mosaic_0001>
module attributes {stable_mosaic.version = 11 : i64} {
  func.func @_memory_kernel(%arg0: i32, %arg1: i32, %arg2: memref<2x128x32xf32, #tpu.memory_space<vmem>>, %arg3: memref<2x32x128xf32, #tpu.memory_space<vmem>>, %arg4: memref<2x128x32xf32, #tpu.memory_space<vmem>>, %arg5: memref<2x32x128xf32, #tpu.memory_space<vmem>>, %arg6: memref<2x64x128xf32, #tpu.memory_space<vmem>>, %arg7: memref<2x128x128xf32, #tpu.memory_space<vmem>>) attributes {dimension_semantics = [#tpu.dimension_semantics<parallel>, #tpu.dimension_semantics<parallel>], iteration_bounds = array<i64: 1, 1>, scalar_prefetch = 0 : i64, scratch_operands = 0 : i64, tpu.core_type = #tpu.core_type<tc>, window_params = [{transform_indices = @transform_0, window_bounds = array<i64: 2, 128, 32>}, {transform_indices = @transform_1, window_bounds = array<i64: 2, 32, 128>}, {transform_indices = @transform_2, window_bounds = array<i64: 2, 128, 32>}, {transform_indices = @transform_3, window_bounds = array<i64: 2, 32, 128>}, {transform_indices = @transform_4, window_bounds = array<i64: 2, 64, 128>}, {transform_indices = @transform_5, window_bounds = array<i64: 2, 128, 128>}]} {
    %c0 = arith.constant 0 : index
    %c0_0 = arith.constant 0 : index
    %c0_1 = arith.constant 0 : index
    %0 = vector.load %arg2[%c0, %c0_0, %c0_1] : memref<2x128x32xf32, #tpu.memory_space<vmem>>, vector<2x128x32xf32>
    %c0_2 = arith.constant 0 : index
    %c0_3 = arith.constant 0 : index
    %c0_4 = arith.constant 0 : index
    %1 = vector.load %arg3[%c0_2, %c0_3, %c0_4] : memref<2x32x128xf32, #tpu.memory_space<vmem>>, vector<2x32x128xf32>
    %c0_5 = arith.constant 0 : index
    %c0_6 = arith.constant 0 : index
    %c0_7 = arith.constant 0 : index
    %2 = vector.load %arg4[%c0_5, %c0_6, %c0_7] : memref<2x128x32xf32, #tpu.memory_space<vmem>>, vector<2x128x32xf32>
    %cst = arith.constant dense<0.000000e+00> : vector<2x128x128xf32>
    %3 = tpu.matmul %0, %1, %cst {dimension_numbers = #tpu.dot_dimension_numbers<[2], [1], [1], [2], [0, 0, 0, 1, 1, 2], [0], [0]>} : vector<2x128x32xf32>, vector<2x32x128xf32>, vector<2x128x128xf32> -> vector<2x128x128xf32>
    %cst_8 = arith.constant 0.176776692 : f32
    %4 = vector.broadcast %cst_8 : f32 to vector<2x128x128xf32>
    %5 = arith.mulf %3, %4 : vector<2x128x128xf32>
    %cst_9 = arith.constant dense<0xFF800000> : vector<2x128xf32>
    %6 = vector.multi_reduction <maximumf>, %5, %cst_9 [1] : vector<2x128x128xf32> to vector<2x128xf32>
    %7 = vector.shape_cast %6 : vector<2x128xf32> to vector<2x1x128xf32>
    %8 = vector.broadcast %7 : vector<2x1x128xf32> to vector<2x128x128xf32>
    %9 = arith.subf %5, %8 : vector<2x128x128xf32>
    %10 = math.exp %9 : vector<2x128x128xf32>
    %cst_10 = arith.constant dense<0.000000e+00> : vector<2x128xf32>
    %11 = vector.multi_reduction <add>, %10, %cst_10 [1] : vector<2x128x128xf32> to vector<2x128xf32>
    %12 = vector.shape_cast %11 : vector<2x128xf32> to vector<2x1x128xf32>
    %13 = tpu.reciprocal %12 {approx = true} : vector<2x1x128xf32> -> vector<2x1x128xf32>
    %14 = arith.mulf %12, %13 : vector<2x1x128xf32>
    %cst_11 = arith.constant 2.000000e+00 : f32
    %15 = vector.broadcast %cst_11 : f32 to vector<2x1x128xf32>
    %16 = arith.subf %15, %14 : vector<2x1x128xf32>
    %17 = arith.mulf %13, %16 : vector<2x1x128xf32>
    %18 = vector.broadcast %17 : vector<2x1x128xf32> to vector<2x128x128xf32>
    %19 = arith.mulf %10, %18 : vector<2x128x128xf32>
    %c0_12 = arith.constant 0 : index
    %c0_13 = arith.constant 0 : index
    %c0_14 = arith.constant 0 : index
    %20 = vector.load %arg7[%c0_12, %c0_13, %c0_14] : memref<2x128x128xf32, #tpu.memory_space<vmem>>, vector<2x128x128xf32>
    tpu.vector_store %arg7[%c0_12, %c0_13, %c0_14], %19 {strides = array<i32>} : memref<2x128x128xf32, #tpu.memory_space<vmem>>, vector<2x128x128xf32>,
    %cst_15 = arith.constant dense<0.000000e+00> : vector<2x32x128xf32>
    %21 = tpu.matmul %2, %19, %cst_15 {dimension_numbers = #tpu.dot_dimension_numbers<[1], [1], [2], [2], [0, 0, 0, 2, 1, 2], [0], [0]>} : vector<2x128x32xf32>, vector<2x128x128xf32>, vector<2x32x128xf32> -> vector<2x32x128xf32>
    %c0_16 = arith.constant 0 : index
    %c0_17 = arith.constant 0 : index
    %c0_18 = arith.constant 0 : index
    %22 = vector.load %arg6[%c0_16, %c0_17, %c0_18] : memref<2x64x128xf32, #tpu.memory_space<vmem>>, vector<2x32x128xf32>
    tpu.vector_store %arg6[%c0_16, %c0_17, %c0_18], %21 {strides = array<i32>} : memref<2x64x128xf32, #tpu.memory_space<vmem>>, vector<2x32x128xf32>,
    %c0_19 = arith.constant 0 : index
    %c0_20 = arith.constant 0 : index
    %c0_21 = arith.constant 0 : index
    %23 = vector.load %arg5[%c0_19, %c0_20, %c0_21] : memref<2x32x128xf32, #tpu.memory_space<vmem>>, vector<2x32x128xf32>
    %c0_22 = arith.constant 0 : index
    %c32 = arith.constant 32 : index
    %c0_23 = arith.constant 0 : index
    %24 = vector.load %arg6[%c0_22, %c32, %c0_23] : memref<2x64x128xf32, #tpu.memory_space<vmem>>, vector<2x32x128xf32>
    tpu.vector_store %arg6[%c0_22, %c32, %c0_23], %23 {strides = array<i32>} : memref<2x64x128xf32, #tpu.memory_space<vmem>>, vector<2x32x128xf32>,
    return
  }
  func.func @transform_0(%arg0: i32, %arg1: i32) -> (i32, i32, i32) {
    %c0_i32 = arith.constant 0 : i32
    %c0_i32_0 = arith.constant 0 : i32
    %c0_i32_1 = arith.constant 0 : i32
    return %arg0, %c0_i32, %c0_i32_0 : i32, i32, i32
  }
  func.func @transform_1(%arg0: i32, %arg1: i32) -> (i32, i32, i32) {
    %c0_i32 = arith.constant 0 : i32
    %c0_i32_0 = arith.constant 0 : i32
    return %arg0, %c0_i32, %arg1 : i32, i32, i32
  }
  func.func @transform_2(%arg0: i32, %arg1: i32) -> (i32, i32, i32) {
    %c0_i32 = arith.constant 0 : i32
    %c0_i32_0 = arith.constant 0 : i32
    %c0_i32_1 = arith.constant 0 : i32
    return %arg0, %c0_i32, %c0_i32_0 : i32, i32, i32
  }
  func.func @transform_3(%arg0: i32, %arg1: i32) -> (i32, i32, i32) {
    %c0_i32 = arith.constant 0 : i32
    %c0_i32_0 = arith.constant 0 : i32
    return %arg0, %c0_i32, %arg1 : i32, i32, i32
  }
  func.func @transform_4(%arg0: i32, %arg1: i32) -> (i32, i32, i32) {
    %c0_i32 = arith.constant 0 : i32
    %c0_i32_0 = arith.constant 0 : i32
    return %arg0, %c0_i32, %arg1 : i32, i32, i32
  }
  func.func @transform_5(%arg0: i32, %arg1: i32) -> (i32, i32, i32) {
    %c0_i32 = arith.constant 0 : i32
    %c0_i32_0 = arith.constant 0 : i32
    return %arg0, %c0_i32, %arg1 : i32, i32, i32
  }
}

</mosaic_0001>

<llo_original>
// kernel: memory_forward.1
$region0: #{memory_forward.1}
  #allocation0 [shape = 'u32[]', space=smem, size = 0x4, offset = 0x4, fixed_abs, tag = 'smem constant byte address 0x4 - core index']
  #allocation1 [shape = 'u32[144,128]{1,0:T(1,128)}', space=vmem, size = 0x12000, scoped, tag = 'internal scratch']
  %s0 = inlined_call_operand.vmem [shape: f32[2,128,32], index: 0, kind: input, shape index: {}]
  %s1 = inlined_call_operand.vmem [shape: f32[2,32,128], index: 1, kind: input, shape index: {}]
  %s2 = inlined_call_operand.vmem [shape: f32[2,128,32], index: 2, kind: input, shape index: {}]
  %s3 = inlined_call_operand.vmem [shape: f32[2,32,128], index: 3, kind: input, shape index: {}]
  %s4 = inlined_call_operand.vmem [shape: f32[2,64,128], index: 4, kind: output, shape index: {0}]
  %s5 = inlined_call_operand.vmem [shape: f32[2,128,128], index: 5, kind: output, shape index: {1}]
  %6 = xla_tuple %s4, %s5
  %s7 = sld [smem:[#allocation0]]
  $region34: #{memory_forward.1} parent=0
    _
  %s9 = ssub.s32 1, %s7
  %s10 = scalar_select 0, %s9, %s7
  // Predicated region
  $region2: #{memory_forward.1} parent=0 // pred_check
    _
  $region3: #{memory_forward.1} parent=0 // pred_check_branch
    %12 = sbr.rel (0) target = $region5
  $region4: #{memory_forward.1} parent=0 // pred_region
    _
  $region5: #{memory_forward.1} parent=0 // pred_fallthru
    _
  // Predicated region
  $region6: #{memory_forward.1} parent=0 // pred_check
    _
  $region7: #{memory_forward.1} parent=0 // pred_check_branch
    %14 = sbr.rel (0) target = $region9
  $region8: #{memory_forward.1} parent=0 // pred_region
    _
  $region9: #{memory_forward.1} parent=0 // pred_fallthru
    _
  // Predicated region
  $region10: #{memory_forward.1} parent=0 // pred_check
    _
  $region11: #{memory_forward.1} parent=0 // pred_check_branch
    %16 = sbr.rel (0) target = $region13
  $region12: #{memory_forward.1} parent=0 // pred_region
    _
  $region13: #{memory_forward.1} parent=0 // pred_fallthru
    _
  // Predicated region
  $region14: #{memory_forward.1} parent=0 // pred_check
    _
  $region15: #{memory_forward.1} parent=0 // pred_check_branch
    %18 = sbr.rel (0) target = $region17
  $region16: #{memory_forward.1} parent=0 // pred_region
    _
  $region17: #{memory_forward.1} parent=0 // pred_fallthru
    _
  %v19 = vld [vmem:[%s0] sm:$0xff]
  %v20 = vld [vmem:[%s0 + $0x8] sm:$0xff]
  %v21 = vld [vmem:[%s0 + $0x10] sm:$0xff]
  %v22 = vld [vmem:[%s0 + $0x18] sm:$0xff]
  %v23 = vld [vmem:[%s0 + $0x20] sm:$0xff]
  %v24 = vld [vmem:[%s0 + $0x28] sm:$0xff]
  %v25 = vld [vmem:[%s0 + $0x30] sm:$0xff]
  %v26 = vld [vmem:[%s0 + $0x38] sm:$0xff]
  %v27 = vld [vmem:[%s0 + $0x40] sm:$0xff]
  %v28 = vld [vmem:[%s0 + $0x48] sm:$0xff]
  %v29 = vld [vmem:[%s0 + $0x50] sm:$0xff]
  %v30 = vld [vmem:[%s0 + $0x58] sm:$0xff]
  %v31 = vld [vmem:[%s0 + $0x60] sm:$0xff]
  %v32 = vld [vmem:[%s0 + $0x68] sm:$0xff]
  %v33 = vld [vmem:[%s0 + $0x70] sm:$0xff]
  %v34 = vld [vmem:[%s0 + $0x78] sm:$0xff]
  %v35 = vld [vmem:[%s0 + $0x80] sm:$0xff]
  %v36 = vld [vmem:[%s0 + $0x88] sm:$0xff]
  %v37 = vld [vmem:[%s0 + $0x90] sm:$0xff]
  %v38 = vld [vmem:[%s0 + $0x98] sm:$0xff]
  %v39 = vld [vmem:[%s0 + $0xa0] sm:$0xff]
  %v40 = vld [vmem:[%s0 + $0xa8] sm:$0xff]
  %v41 = vld [vmem:[%s0 + $0xb0] sm:$0xff]
  %v42 = vld [vmem:[%s0 + $0xb8] sm:$0xff]
  %v43 = vld [vmem:[%s0 + $0xc0] sm:$0xff]
  %v44 = vld [vmem:[%s0 + $0xc8] sm:$0xff]
  %v45 = vld [vmem:[%s0 + $0xd0] sm:$0xff]
  %v46 = vld [vmem:[%s0 + $0xd8] sm:$0xff]
  %v47 = vld [vmem:[%s0 + $0xe0] sm:$0xff]
  %v48 = vld [vmem:[%s0 + $0xe8] sm:$0xff]
  %v49 = vld [vmem:[%s0 + $0xf0] sm:$0xff]
  %v50 = vld [vmem:[%s0 + $0xf8] sm:$0xff]
  %v51 = vld [vmem:[%s1] sm:$0xff]
  %v52 = vld [vmem:[%s1 + $0x8] sm:$0xff]
  %v53 = vld [vmem:[%s1 + $0x10] sm:$0xff]
  %v54 = vld [vmem:[%s1 + $0x18] sm:$0xff]
  %v55 = vld [vmem:[%s1 + $0x20] sm:$0xff]
  %v56 = vld [vmem:[%s1 + $0x28] sm:$0xff]
  %v57 = vld [vmem:[%s1 + $0x30] sm:$0xff]
  %v58 = vld [vmem:[%s1 + $0x38] sm:$0xff]
  %v59 = vld [vmem:[%s2] sm:$0xff]
  %v60 = vld [vmem:[%s2 + $0x8] sm:$0xff]
  %v61 = vld [vmem:[%s2 + $0x10] sm:$0xff]
  %v62 = vld [vmem:[%s2 + $0x18] sm:$0xff]
  %v63 = vld [vmem:[%s2 + $0x20] sm:$0xff]
  %v64 = vld [vmem:[%s2 + $0x28] sm:$0xff]
  %v65 = vld [vmem:[%s2 + $0x30] sm:$0xff]
  %v66 = vld [vmem:[%s2 + $0x38] sm:$0xff]
  %v67 = vld [vmem:[%s2 + $0x40] sm:$0xff]
  %v68 = vld [vmem:[%s2 + $0x48] sm:$0xff]
  %v69 = vld [vmem:[%s2 + $0x50] sm:$0xff]
  %v70 = vld [vmem:[%s2 + $0x58] sm:$0xff]
  %v71 = vld [vmem:[%s2 + $0x60] sm:$0xff]
  %v72 = vld [vmem:[%s2 + $0x68] sm:$0xff]
  %v73 = vld [vmem:[%s2 + $0x70] sm:$0xff]
  %v74 = vld [vmem:[%s2 + $0x78] sm:$0xff]
  %v75 = vld [vmem:[%s2 + $0x80] sm:$0xff]
  %v76 = vld [vmem:[%s2 + $0x88] sm:$0xff]
  %v77 = vld [vmem:[%s2 + $0x90] sm:$0xff]
  %v78 = vld [vmem:[%s2 + $0x98] sm:$0xff]
  %v79 = vld [vmem:[%s2 + $0xa0] sm:$0xff]
  %v80 = vld [vmem:[%s2 + $0xa8] sm:$0xff]
  %v81 = vld [vmem:[%s2 + $0xb0] sm:$0xff]
  %v82 = vld [vmem:[%s2 + $0xb8] sm:$0xff]
  %v83 = vld [vmem:[%s2 + $0xc0] sm:$0xff]
  %v84 = vld [vmem:[%s2 + $0xc8] sm:$0xff]
  %v85 = vld [vmem:[%s2 + $0xd0] sm:$0xff]
  %v86 = vld [vmem:[%s2 + $0xd8] sm:$0xff]
  %v87 = vld [vmem:[%s2 + $0xe0] sm:$0xff]
  %v88 = vld [vmem:[%s2 + $0xe8] sm:$0xff]
  %v89 = vld [vmem:[%s2 + $0xf0] sm:$0xff]
  %v90 = vld [vmem:[%s2 + $0xf8] sm:$0xff]
  %vm91 = vcmask 261120
  %v93 = vsel %vm91, %v19, 0
  %v96 = vsel %vm91, %v20, 0
  %v99 = vsel %vm91, %v21, 0
  %v102 = vsel %vm91, %v22, 0
  %v105 = vsel %vm91, %v23, 0
  %v108 = vsel %vm91, %v24, 0
  %v111 = vsel %vm91, %v25, 0
  %v114 = vsel %vm91, %v26, 0
  %v117 = vsel %vm91, %v27, 0
  %v120 = vsel %vm91, %v28, 0
  %v123 = vsel %vm91, %v29, 0
  %v126 = vsel %vm91, %v30, 0
  %v129 = vsel %vm91, %v31, 0
  %v132 = vsel %vm91, %v32, 0
  %v135 = vsel %vm91, %v33, 0
  %v138 = vsel %vm91, %v34, 0
  %140 = vmatprep.subr.mxu0 0.0
  %141 = vmatpush1.msra.mxu0 0.0
  %142 = vmatprep.subr.mxu0 0.0
  %143 = vmatpush1.msra.mxu0 0.0
  %144 = vmatprep.subr.mxu0 0.0
  %145 = vmatpush1.msra.mxu0 0.0
  %146 = vmatprep.subr.mxu0 0.0
  %147 = vmatpush1.msra.mxu0 0.0
  %148 = vmatprep.subr.mxu0 0.0
  %149 = vmatpush1.msra.mxu0 0.0
  %150 = vmatprep.subr.mxu0 0.0
  %151 = vmatpush1.msra.mxu0 0.0
  %152 = vmatprep.subr.mxu0 0.0
  %153 = vmatpush1.msra.mxu0 0.0
  %154 = vmatprep.subr.mxu0 0.0
  %155 = vmatpush1.msra.mxu0 0.0
  %156 = vmatprep.subr.mxu0 0.0
  %157 = vmatpush1.msra.mxu0 0.0
  %158 = vmatprep.subr.mxu0 0.0
  %159 = vmatpush1.msra.mxu0 0.0
  %160 = vmatprep.subr.mxu0 0.0
  %161 = vmatpush1.msra.mxu0 0.0
  %162 = vmatprep.subr.mxu0 0.0
  %163 = vmatpush1.msra.mxu0 0.0
  %164 = vmatprep.subr.mxu0 0.0
  %165 = vmatpush1.msra.mxu0 %v54
  %166 = vmatprep.subr.mxu0 0.0
  %167 = vmatpush1.msra.mxu0 %v53
  %168 = vmatprep.subr.mxu0 0.0
  %169 = vmatpush1.msra.mxu0 %v52
  %170 = vmatprep.subr.mxu0 0.0
  %171 = vmatpush1.msra.mxu0 %v51
  %172 = vmatprep.subr.mxu0 0.0
  %173 = vmatpush2.msra.mxu0 0.0
  %174 = vmatprep.subr.mxu0 0.0
  %175 = vmatpush2.msra.mxu0 0.0
  %176 = vmatprep.subr.mxu0 0.0
  %177 = vmatpush2.msra.mxu0 0.0
  %178 = vmatprep.subr.mxu0 0.0
  %179 = vmatpush2.msra.mxu0 0.0
  %180 = vmatprep.subr.mxu0 0.0
  %181 = vmatpush2.msra.mxu0 0.0
  %182 = vmatprep.subr.mxu0 0.0
  %183 = vmatpush2.msra.mxu0 0.0
  %184 = vmatprep.subr.mxu0 0.0
  %185 = vmatpush2.msra.mxu0 0.0
  %186 = vmatprep.subr.mxu0 0.0
  %187 = vmatpush2.msra.mxu0 0.0
  %188 = vmatprep.subr.mxu0 0.0
  %189 = vmatpush2.msra.mxu0 0.0
  %190 = vmatprep.subr.mxu0 0.0
  %191 = vmatpush2.msra.mxu0 0.0
  %192 = vmatprep.subr.mxu0 0.0
  %193 = vmatpush2.msra.mxu0 0.0
  %194 = vmatprep.subr.mxu0 0.0
  %195 = vmatpush2.msra.mxu0 0.0
  %196 = vmatprep.subr.mxu0 0.0
  %197 = vmatpush2.msra.mxu0 0.0
  %198 = vmatprep.subr.mxu0 0.0
  %199 = vmatpush2.msra.mxu0 0.0
  %200 = vmatprep.subr.mxu0 0.0
  %201 = vmatpush2.msra.mxu0 0.0
  %202 = vmatprep.subr.mxu0 0.0
  %203 = vmatpush2.msra.mxu0 0.0
  %204 = vmatprep.mubr.f32.mxu0 0.0
  %205 = vmatmul.mubr.f32.gmra.mxu0 %v93
  %v206 = vpop.f32.mrf.mxu0
  %v207 = vadd.f32 0.0, %v206
  %v208 = vpop.f32.mrf.mxu0
  %209 = vmatprep.mubr.f32.mxu0 0.0
  %210 = vmatmul.mubr.f32.gmra.mxu0 %v96
  %v211 = vpop.f32.mrf.mxu0
  %v212 = vadd.f32 0.0, %v211
  %v213 = vpop.f32.mrf.mxu0
  %214 = vmatprep.mubr.f32.mxu0 0.0
  %215 = vmatmul.mubr.f32.gmra.mxu0 %v99
  %v216 = vpop.f32.mrf.mxu0
  %v217 = vadd.f32 0.0, %v216
  %v218 = vpop.f32.mrf.mxu0
  %219 = vmatprep.mubr.f32.mxu0 0.0
  %220 = vmatmul.mubr.f32.gmra.mxu0 %v102
  %v221 = vpop.f32.mrf.mxu0
  %v222 = vadd.f32 0.0, %v221
  %v223 = vpop.f32.mrf.mxu0
  %224 = vmatprep.mubr.f32.mxu0 0.0
  %225 = vmatmul.mubr.f32.gmra.mxu0 %v105
  %v226 = vpop.f32.mrf.mxu0
  %v227 = vadd.f32 0.0, %v226
  %v228 = vpop.f32.mrf.mxu0
  %229 = vmatprep.mubr.f32.mxu0 0.0
  %230 = vmatmul.mubr.f32.gmra.mxu0 %v108
  %v231 = vpop.f32.mrf.mxu0
  %v232 = vadd.f32 0.0, %v231
  %v233 = vpop.f32.mrf.mxu0
  %234 = vmatprep.mubr.f32.mxu0 0.0
  %235 = vmatmul.mubr.f32.gmra.mxu0 %v111
  %v236 = vpop.f32.mrf.mxu0
  %v237 = vadd.f32 0.0, %v236
  %v238 = vpop.f32.mrf.mxu0
  %239 = vmatprep.mubr.f32.mxu0 0.0
  %240 = vmatmul.mubr.f32.gmra.mxu0 %v114
  %v241 = vpop.f32.mrf.mxu0
  %v242 = vadd.f32 0.0, %v241
  %v243 = vpop.f32.mrf.mxu0
  %244 = vmatprep.mubr.f32.mxu0 0.0
  %245 = vmatmul.mubr.f32.gmra.mxu0 %v117
  %v246 = vpop.f32.mrf.mxu0
  %v247 = vadd.f32 0.0, %v246
  %v248 = vpop.f32.mrf.mxu0
  %249 = vmatprep.mubr.f32.mxu0 0.0
  %250 = vmatmul.mubr.f32.gmra.mxu0 %v120
  %v251 = vpop.f32.mrf.mxu0
  %v252 = vadd.f32 0.0, %v251
  %v253 = vpop.f32.mrf.mxu0
  %254 = vmatprep.mubr.f32.mxu0 0.0
  %255 = vmatmul.mubr.f32.gmra.mxu0 %v123
  %v256 = vpop.f32.mrf.mxu0
  %v257 = vadd.f32 0.0, %v256
  %v258 = vpop.f32.mrf.mxu0
  %259 = vmatprep.mubr.f32.mxu0 0.0
  %260 = vmatmul.mubr.f32.gmra.mxu0 %v126
  %v261 = vpop.f32.mrf.mxu0
  %v262 = vadd.f32 0.0, %v261
  %v263 = vpop.f32.mrf.mxu0
  %264 = vmatprep.mubr.f32.mxu0 0.0
  %265 = vmatmul.mubr.f32.gmra.mxu0 %v129
  %v266 = vpop.f32.mrf.mxu0
  %v267 = vadd.f32 0.0, %v266
  %v268 = vpop.f32.mrf.mxu0
  %269 = vmatprep.mubr.f32.mxu0 0.0
  %270 = vmatmul.mubr.f32.gmra.mxu0 %v132
  %v271 = vpop.f32.mrf.mxu0
  %v272 = vadd.f32 0.0, %v271
  %v273 = vpop.f32.mrf.mxu0
  %274 = vmatprep.mubr.f32.mxu0 0.0
  %275 = vmatmul.mubr.f32.gmra.mxu0 %v135
  %v276 = vpop.f32.mrf.mxu0
  %v277 = vadd.f32 0.0, %v276
  %v278 = vpop.f32.mrf.mxu0
  %279 = vmatprep.mubr.f32.mxu0 0.0
  %280 = vmatmul.mubr.f32.gmra.mxu0 %v138
  %v281 = vpop.f32.mrf.mxu0
  %v282 = vadd.f32 0.0, %v281
  %v283 = vpop.f32.mrf.mxu0
  %284 = vdwg.mxu0
  %v286 = vsel %vm91, %v35, 0
  %v289 = vsel %vm91, %v36, 0
  %v292 = vsel %vm91, %v37, 0
  %v295 = vsel %vm91, %v38, 0
  %v298 = vsel %vm91, %v39, 0
  %v301 = vsel %vm91, %v40, 0
  %v304 = vsel %vm91, %v41, 0
  %v307 = vsel %vm91, %v42, 0
  %v310 = vsel %vm91, %v43, 0
  %v313 = vsel %vm91, %v44, 0
  %v316 = vsel %vm91, %v45, 0
  %v319 = vsel %vm91, %v46, 0
  %v322 = vsel %vm91, %v47, 0
  %v325 = vsel %vm91, %v48, 0
  %v328 = vsel %vm91, %v49, 0
  %v331 = vsel %vm91, %v50, 0
  %333 = vmatprep.subr.mxu0 0.0
  %334 = vmatpush1.msra.mxu0 0.0
  %335 = vmatprep.subr.mxu0 0.0
  %336 = vmatpush1.msra.mxu0 0.0
  %337 = vmatprep.subr.mxu0 0.0
  %338 = vmatpush1.msra.mxu0 0.0
  %339 = vmatprep.subr.mxu0 0.0
  %340 = vmatpush1.msra.mxu0 0.0
  %341 = vmatprep.subr.mxu0 0.0
  %342 = vmatpush1.msra.mxu0 0.0
  %343 = vmatprep.subr.mxu0 0.0
  %344 = vmatpush1.msra.mxu0 0.0
  %345 = vmatprep.subr.mxu0 0.0
  %346 = vmatpush1.msra.mxu0 0.0
  %347 = vmatprep.subr.mxu0 0.0
  %348 = vmatpush1.msra.mxu0 0.0
  %349 = vmatprep.subr.mxu0 0.0
  %350 = vmatpush1.msra.mxu0 0.0
  %351 = vmatprep.subr.mxu0 0.0
  %352 = vmatpush1.msra.mxu0 0.0
  %353 = vmatprep.subr.mxu0 0.0
  %354 = vmatpush1.msra.mxu0 0.0
  %355 = vmatprep.subr.mxu0 0.0
  %356 = vmatpush1.msra.mxu0 0.0
  %357 = vmatprep.subr.mxu0 0.0
  %358 = vmatpush1.msra.mxu0 %v58
  %359 = vmatprep.subr.mxu0 0.0
  %360 = vmatpush1.msra.mxu0 %v57
  %361 = vmatprep.subr.mxu0 0.0
  %362 = vmatpush1.msra.mxu0 %v56
  %363 = vmatprep.subr.mxu0 0.0
  %364 = vmatpush1.msra.mxu0 %v55
  %365 = vmatprep.subr.mxu0 0.0
  %366 = vmatpush2.msra.mxu0 0.0
  %367 = vmatprep.subr.mxu0 0.0
  %368 = vmatpush2.msra.mxu0 0.0
  %369 = vmatprep.subr.mxu0 0.0
  %370 = vmatpush2.msra.mxu0 0.0
  %371 = vmatprep.subr.mxu0 0.0
  %372 = vmatpush2.msra.mxu0 0.0
  %373 = vmatprep.subr.mxu0 0.0
  %374 = vmatpush2.msra.mxu0 0.0
  %375 = vmatprep.subr.mxu0 0.0
  %376 = vmatpush2.msra.mxu0 0.0
  %377 = vmatprep.subr.mxu0 0.0
  %378 = vmatpush2.msra.mxu0 0.0
  %379 = vmatprep.subr.mxu0 0.0
  %380 = vmatpush2.msra.mxu0 0.0
  %381 = vmatprep.subr.mxu0 0.0
  %382 = vmatpush2.msra.mxu0 0.0
  %383 = vmatprep.subr.mxu0 0.0
  %384 = vmatpush2.msra.mxu0 0.0
  %385 = vmatprep.subr.mxu0 0.0
  %386 = vmatpush2.msra.mxu0 0.0
  %387 = vmatprep.subr.mxu0 0.0
  %388 = vmatpush2.msra.mxu0 0.0
  %389 = vmatprep.subr.mxu0 0.0
  %390 = vmatpush2.msra.mxu0 0.0
  %391 = vmatprep.subr.mxu0 0.0
  %392 = vmatpush2.msra.mxu0 0.0
  %393 = vmatprep.subr.mxu0 0.0
  %394 = vmatpush2.msra.mxu0 0.0
  %395 = vmatprep.subr.mxu0 0.0
  %396 = vmatpush2.msra.mxu0 0.0
  %397 = vmatprep.mubr.f32.mxu0 0.0
  %398 = vmatmul.mubr.f32.gmra.mxu0 %v286
  %v399 = vpop.f32.mrf.mxu0
  %v400 = vadd.f32 0.0, %v399
  %v401 = vpop.f32.mrf.mxu0
  %402 = vmatprep.mubr.f32.mxu0 0.0
  %403 = vmatmul.mubr.f32.gmra.mxu0 %v289
  %v404 = vpop.f32.mrf.mxu0
  %v405 = vadd.f32 0.0, %v404
  %v406 = vpop.f32.mrf.mxu0
  %407 = vmatprep.mubr.f32.mxu0 0.0
  %408 = vmatmul.mubr.f32.gmra.mxu0 %v292
  %v409 = vpop.f32.mrf.mxu0
  %v410 = vadd.f32 0.0, %v409
  %v411 = vpop.f32.mrf.mxu0
  %412 = vmatprep.mubr.f32.mxu0 0.0
  %413 = vmatmul.mubr.f32.gmra.mxu0 %v295
  %v414 = vpop.f32.mrf.mxu0
  %v415 = vadd.f32 0.0, %v414
  %v416 = vpop.f32.mrf.mxu0
  %417 = vmatprep.mubr.f32.mxu0 0.0
  %418 = vmatmul.mubr.f32.gmra.mxu0 %v298
  %v419 = vpop.f32.mrf.mxu0
  %v420 = vadd.f32 0.0, %v419
  %v421 = vpop.f32.mrf.mxu0
  %422 = vmatprep.mubr.f32.mxu0 0.0
  %423 = vmatmul.mubr.f32.gmra.mxu0 %v301
  %v424 = vpop.f32.mrf.mxu0
  %v425 = vadd.f32 0.0, %v424
  %v426 = vpop.f32.mrf.mxu0
  %427 = vmatprep.mubr.f32.mxu0 0.0
  %428 = vmatmul.mubr.f32.gmra.mxu0 %v304
  %v429 = vpop.f32.mrf.mxu0
  %v430 = vadd.f32 0.0, %v429
  %v431 = vpop.f32.mrf.mxu0
  %432 = vmatprep.mubr.f32.mxu0 0.0
  %433 = vmatmul.mubr.f32.gmra.mxu0 %v307
  %v434 = vpop.f32.mrf.mxu0
  %v435 = vadd.f32 0.0, %v434
  %v436 = vpop.f32.mrf.mxu0
  %437 = vmatprep.mubr.f32.mxu0 0.0
  %438 = vmatmul.mubr.f32.gmra.mxu0 %v310
  %v439 = vpop.f32.mrf.mxu0
  %v440 = vadd.f32 0.0, %v439
  %v441 = vpop.f32.mrf.mxu0
  %442 = vmatprep.mubr.f32.mxu0 0.0
  %443 = vmatmul.mubr.f32.gmra.mxu0 %v313
  %v444 = vpop.f32.mrf.mxu0
  %v445 = vadd.f32 0.0, %v444
  %v446 = vpop.f32.mrf.mxu0
  %447 = vmatprep.mubr.f32.mxu0 0.0
  %448 = vmatmul.mubr.f32.gmra.mxu0 %v316
  %v449 = vpop.f32.mrf.mxu0
  %v450 = vadd.f32 0.0, %v449
  %v451 = vpop.f32.mrf.mxu0
  %452 = vmatprep.mubr.f32.mxu0 0.0
  %453 = vmatmul.mubr.f32.gmra.mxu0 %v319
  %v454 = vpop.f32.mrf.mxu0
  %v455 = vadd.f32 0.0, %v454
  %v456 = vpop.f32.mrf.mxu0
  %457 = vmatprep.mubr.f32.mxu0 0.0
  %458 = vmatmul.mubr.f32.gmra.mxu0 %v322
  %v459 = vpop.f32.mrf.mxu0
  %v460 = vadd.f32 0.0, %v459
  %v461 = vpop.f32.mrf.mxu0
  %462 = vmatprep.mubr.f32.mxu0 0.0
  %463 = vmatmul.mubr.f32.gmra.mxu0 %v325
  %v464 = vpop.f32.mrf.mxu0
  %v465 = vadd.f32 0.0, %v464
  %v466 = vpop.f32.mrf.mxu0
  %467 = vmatprep.mubr.f32.mxu0 0.0
  %468 = vmatmul.mubr.f32.gmra.mxu0 %v328
  %v469 = vpop.f32.mrf.mxu0
  %v470 = vadd.f32 0.0, %v469
  %v471 = vpop.f32.mrf.mxu0
  %472 = vmatprep.mubr.f32.mxu0 0.0
  %473 = vmatmul.mubr.f32.gmra.mxu0 %v331
  %v474 = vpop.f32.mrf.mxu0
  %v475 = vadd.f32 0.0, %v474
  %v476 = vpop.f32.mrf.mxu0
  %477 = vdwg.mxu0
  %v478 = vmul.f32 %v207, 0.17677669
  %v479 = vmul.f32 %v212, 0.17677669
  %v480 = vmul.f32 %v217, 0.17677669
  %v481 = vmul.f32 %v222, 0.17677669
  %v482 = vmul.f32 %v227, 0.17677669
  %v483 = vmul.f32 %v232, 0.17677669
  %v484 = vmul.f32 %v237, 0.17677669
  %v485 = vmul.f32 %v242, 0.17677669
  %v486 = vmul.f32 %v247, 0.17677669
  %v487 = vmul.f32 %v252, 0.17677669
  %v488 = vmul.f32 %v257, 0.17677669
  %v489 = vmul.f32 %v262, 0.17677669
  %v490 = vmul.f32 %v267, 0.17677669
  %v491 = vmul.f32 %v272, 0.17677669
  %v492 = vmul.f32 %v277, 0.17677669
  %v493 = vmul.f32 %v282, 0.17677669
  %v494 = vmul.f32 %v400, 0.17677669
  %v495 = vmul.f32 %v405, 0.17677669
  %v496 = vmul.f32 %v410, 0.17677669
  %v497 = vmul.f32 %v415, 0.17677669
  %v498 = vmul.f32 %v420, 0.17677669
  %v499 = vmul.f32 %v425, 0.17677669
  %v500 = vmul.f32 %v430, 0.17677669
  %v501 = vmul.f32 %v435, 0.17677669
  %v502 = vmul.f32 %v440, 0.17677669
  %v503 = vmul.f32 %v445, 0.17677669
  %v504 = vmul.f32 %v450, 0.17677669
  %v505 = vmul.f32 %v455, 0.17677669
  %v506 = vmul.f32 %v460, 0.17677669
  %v507 = vmul.f32 %v465, 0.17677669
  %v508 = vmul.f32 %v470, 0.17677669
  %v509 = vmul.f32 %v475, 0.17677669
  %v510 = vmax.f32 %v478, %v480
  %v511 = vmax.f32 %v479, %v481
  %v512 = vmax.f32 %v510, %v482
  %v513 = vmax.f32 %v511, %v483
  %v514 = vmax.f32 %v512, %v484
  %v515 = vmax.f32 %v513, %v485
  %v516 = vmax.f32 %v514, %v486
  %v517 = vmax.f32 %v515, %v487
  %v518 = vmax.f32 %v516, %v488
  %v519 = vmax.f32 %v517, %v489
  %v520 = vmax.f32 %v518, %v490
  %v521 = vmax.f32 %v519, %v491
  %v522 = vmax.f32 %v520, %v492
  %v523 = vmax.f32 %v521, %v493
  %v524 = vmax.f32 %v522, %v523
  %v525 = vrot.slane %v524, 4
  %v526 = vmax.f32 %v524, %v525
  %v527 = vrot.slane %v526, 2
  %v528 = vmax.f32 %v526, %v527
  %v529 = vrot.slane %v528, 1
  %v530 = vmax.f32 %v528, %v529
  %v531 = vmax.f32 %v494, %v496
  %v532 = vmax.f32 %v495, %v497
  %v533 = vmax.f32 %v531, %v498
  %v534 = vmax.f32 %v532, %v499
  %v535 = vmax.f32 %v533, %v500
  %v536 = vmax.f32 %v534, %v501
  %v537 = vmax.f32 %v535, %v502
  %v538 = vmax.f32 %v536, %v503
  %v539 = vmax.f32 %v537, %v504
  %v540 = vmax.f32 %v538, %v505
  %v541 = vmax.f32 %v539, %v506
  %v542 = vmax.f32 %v540, %v507
  %v543 = vmax.f32 %v541, %v508
  %v544 = vmax.f32 %v542, %v509
  %v545 = vmax.f32 %v543, %v544
  %v546 = vrot.slane %v545, 4
  %v547 = vmax.f32 %v545, %v546
  %v548 = vrot.slane %v547, 2
  %v549 = vmax.f32 %v547, %v548
  %v550 = vrot.slane %v549, 1
  %v551 = vmax.f32 %v549, %v550
  %v552 = vsub.f32 %v478, %v530
  %v553 = vsub.f32 %v479, %v530
  %v554 = vsub.f32 %v480, %v530
  %v555 = vsub.f32 %v481, %v530
  %v556 = vsub.f32 %v482, %v530
  %v557 = vsub.f32 %v483, %v530
  %v558 = vsub.f32 %v484, %v530
  %v559 = vsub.f32 %v485, %v530
  %v560 = vsub.f32 %v486, %v530
  %v561 = vsub.f32 %v487, %v530
  %v562 = vsub.f32 %v488, %v530
  %v563 = vsub.f32 %v489, %v530
  %v564 = vsub.f32 %v490, %v530
  %v565 = vsub.f32 %v491, %v530
  %v566 = vsub.f32 %v492, %v530
  %v567 = vsub.f32 %v493, %v530
  %v568 = vsub.f32 %v494, %v551
  %v569 = vsub.f32 %v495, %v551
  %v570 = vsub.f32 %v496, %v551
  %v571 = vsub.f32 %v497, %v551
  %v572 = vsub.f32 %v498, %v551
  %v573 = vsub.f32 %v499, %v551
  %v574 = vsub.f32 %v500, %v551
  %v575 = vsub.f32 %v501, %v551
  %v576 = vsub.f32 %v502, %v551
  %v577 = vsub.f32 %v503, %v551
  %v578 = vsub.f32 %v504, %v551
  %v579 = vsub.f32 %v505, %v551
  %v580 = vsub.f32 %v506, %v551
  %v581 = vsub.f32 %v507, %v551
  %v582 = vsub.f32 %v508, %v551
  %v583 = vsub.f32 %v509, %v551
  %v584 = vmul.f32 %v552, 1.442695
  %v585 = vpow.pop %v584
  %v586 = vmul.f32 %v553, 1.442695
  %v587 = vpow.pop %v586
  %v588 = vmul.f32 %v554, 1.442695
  %v589 = vpow.pop %v588
  %v590 = vmul.f32 %v555, 1.442695
  %v591 = vpow.pop %v590
  %v592 = vmul.f32 %v556, 1.442695
  %v593 = vpow.pop %v592
  %v594 = vmul.f32 %v557, 1.442695
  %v595 = vpow.pop %v594
  %v596 = vmul.f32 %v558, 1.442695
  %v597 = vpow.pop %v596
  %v598 = vmul.f32 %v559, 1.442695
  %v599 = vpow.pop %v598
  %v600 = vmul.f32 %v560, 1.442695
  %v601 = vpow.pop %v600
  %v602 = vmul.f32 %v561, 1.442695
  %v603 = vpow.pop %v602
  %v604 = vmul.f32 %v562, 1.442695
  %v605 = vpow.pop %v604
  %v606 = vmul.f32 %v563, 1.442695
  %v607 = vpow.pop %v606
  %v608 = vmul.f32 %v564, 1.442695
  %v609 = vpow.pop %v608
  %v610 = vmul.f32 %v565, 1.442695
  %v611 = vpow.pop %v610
  %v612 = vmul.f32 %v566, 1.442695
  %v613 = vpow.pop %v612
  %v614 = vmul.f32 %v567, 1.442695
  %v615 = vpow.pop %v614
  %v616 = vmul.f32 %v568, 1.442695
  %v617 = vpow.pop %v616
  %v618 = vmul.f32 %v569, 1.442695
  %v619 = vpow.pop %v618
  %v620 = vmul.f32 %v570, 1.442695
  %v621 = vpow.pop %v620
  %v622 = vmul.f32 %v571, 1.442695
  %v623 = vpow.pop %v622
  %v624 = vmul.f32 %v572, 1.442695
  %v625 = vpow.pop %v624
  %v626 = vmul.f32 %v573, 1.442695
  %v627 = vpow.pop %v626
  %v628 = vmul.f32 %v574, 1.442695
  %v629 = vpow.pop %v628
  %v630 = vmul.f32 %v575, 1.442695
  %v631 = vpow.pop %v630
  %v632 = vmul.f32 %v576, 1.442695
  %v633 = vpow.pop %v632
  %v634 = vmul.f32 %v577, 1.442695
  %v635 = vpow.pop %v634
  %v636 = vmul.f32 %v578, 1.442695
  %v637 = vpow.pop %v636
  %v638 = vmul.f32 %v579, 1.442695
  %v639 = vpow.pop %v638
  %v640 = vmul.f32 %v580, 1.442695
  %v641 = vpow.pop %v640
  %v642 = vmul.f32 %v581, 1.442695
  %v643 = vpow.pop %v642
  %v644 = vmul.f32 %v582, 1.442695
  %v645 = vpow.pop %v644
  %v646 = vmul.f32 %v583, 1.442695
  %v647 = vpow.pop %v646
  %v648 = vadd.f32 %v585, %v587
  %v649 = vadd.f32 %v648, %v589
  %v650 = vadd.f32 %v649, %v591
  %v651 = vadd.f32 %v650, %v593
  %v652 = vadd.f32 %v651, %v595
  %v653 = vadd.f32 %v652, %v597
  %v654 = vadd.f32 %v653, %v599
  %v655 = vadd.f32 %v654, %v601
  %v656 = vadd.f32 %v655, %v603
  %v657 = vadd.f32 %v656, %v605
  %v658 = vadd.f32 %v657, %v607
  %v659 = vadd.f32 %v658, %v609
  %v660 = vadd.f32 %v659, %v611
  %v661 = vadd.f32 %v660, %v613
  %v662 = vadd.f32 %v661, %v615
  %v663 = vrot.slane %v662, 4
  %v664 = vadd.f32 %v662, %v663
  %v665 = vrot.slane %v664, 2
  %v666 = vadd.f32 %v664, %v665
  %v667 = vrot.slane %v666, 1
  %v668 = vadd.f32 %v666, %v667
  %v669 = vadd.f32 %v617, %v619
  %v670 = vadd.f32 %v669, %v621
  %v671 = vadd.f32 %v670, %v623
  %v672 = vadd.f32 %v671, %v625
  %v673 = vadd.f32 %v672, %v627
  %v674 = vadd.f32 %v673, %v629
  %v675 = vadd.f32 %v674, %v631
  %v676 = vadd.f32 %v675, %v633
  %v677 = vadd.f32 %v676, %v635
  %v678 = vadd.f32 %v677, %v637
  %v679 = vadd.f32 %v678, %v639
  %v680 = vadd.f32 %v679, %v641
  %v681 = vadd.f32 %v680, %v643
  %v682 = vadd.f32 %v681, %v645
  %v683 = vadd.f32 %v682, %v647
  %v684 = vrot.slane %v683, 4
  %v685 = vadd.f32 %v683, %v684
  %v686 = vrot.slane %v685, 2
  %v687 = vadd.f32 %v685, %v686
  %v688 = vrot.slane %v687, 1
  %v689 = vadd.f32 %v687, %v688
  %v690 = vrcp.pop %v668
  %v691 = vrcp.pop %v689
  %v692 = vmul.f32 %v668, %v690
  %v693 = vmul.f32 %v689, %v691
  %v694 = vsub.f32 2.0, %v692
  %v695 = vsub.f32 2.0, %v693
  %v696 = vmul.f32 %v690, %v694
  %v697 = vmul.f32 %v691, %v695
  %v698 = vmul.f32 %v585, %v696
  %v699 = vmul.f32 %v587, %v696
  %v700 = vmul.f32 %v589, %v696
  %v701 = vmul.f32 %v591, %v696
  %v702 = vmul.f32 %v593, %v696
  %v703 = vmul.f32 %v595, %v696
  %v704 = vmul.f32 %v597, %v696
  %v705 = vmul.f32 %v599, %v696
  %v706 = vmul.f32 %v601, %v696
  %v707 = vmul.f32 %v603, %v696
  %v708 = vmul.f32 %v605, %v696
  %v709 = vmul.f32 %v607, %v696
  %v710 = vmul.f32 %v609, %v696
  %v711 = vmul.f32 %v611, %v696
  %v712 = vmul.f32 %v613, %v696
  %v713 = vmul.f32 %v615, %v696
  %v714 = vmul.f32 %v617, %v697
  %v715 = vmul.f32 %v619, %v697
  %v716 = vmul.f32 %v621, %v697
  %v717 = vmul.f32 %v623, %v697
  %v718 = vmul.f32 %v625, %v697
  %v719 = vmul.f32 %v627, %v697
  %v720 = vmul.f32 %v629, %v697
  %v721 = vmul.f32 %v631, %v697
  %v722 = vmul.f32 %v633, %v697
  %v723 = vmul.f32 %v635, %v697
  %v724 = vmul.f32 %v637, %v697
  %v725 = vmul.f32 %v639, %v697
  %v726 = vmul.f32 %v641, %v697
  %v727 = vmul.f32 %v643, %v697
  %v728 = vmul.f32 %v645, %v697
  %v729 = vmul.f32 %v647, %v697
  %730 = vst [vmem:[%s5] sm:$0xff] %v698
  %731 = vst [vmem:[%s5 + $0x8] sm:$0xff] %v699
  %732 = vst [vmem:[%s5 + $0x10] sm:$0xff] %v700
  %733 = vst [vmem:[%s5 + $0x18] sm:$0xff] %v701
  %734 = vst [vmem:[%s5 + $0x20] sm:$0xff] %v702
  %735 = vst [vmem:[%s5 + $0x28] sm:$0xff] %v703
  %736 = vst [vmem:[%s5 + $0x30] sm:$0xff] %v704
  %737 = vst [vmem:[%s5 + $0x38] sm:$0xff] %v705
  %738 = vst [vmem:[%s5 + $0x40] sm:$0xff] %v706
  %739 = vst [vmem:[%s5 + $0x48] sm:$0xff] %v707
  %740 = vst [vmem:[%s5 + $0x50] sm:$0xff] %v708
  %741 = vst [vmem:[%s5 + $0x58] sm:$0xff] %v709
  %742 = vst [vmem:[%s5 + $0x60] sm:$0xff] %v710
  %743 = vst [vmem:[%s5 + $0x68] sm:$0xff] %v711
  %744 = vst [vmem:[%s5 + $0x70] sm:$0xff] %v712
  %745 = vst [vmem:[%s5 + $0x78] sm:$0xff] %v713
  %746 = vst [vmem:[%s5 + $0x80] sm:$0xff] %v714
  %747 = vst [vmem:[%s5 + $0x88] sm:$0xff] %v715
  %748 = vst [vmem:[%s5 + $0x90] sm:$0xff] %v716
  %749 = vst [vmem:[%s5 + $0x98] sm:$0xff] %v717
  %750 = vst [vmem:[%s5 + $0xa0] sm:$0xff] %v718
  %751 = vst [vmem:[%s5 + $0xa8] sm:$0xff] %v719
  %752 = vst [vmem:[%s5 + $0xb0] sm:$0xff] %v720
  %753 = vst [vmem:[%s5 + $0xb8] sm:$0xff] %v721
  %754 = vst [vmem:[%s5 + $0xc0] sm:$0xff] %v722
  %755 = vst [vmem:[%s5 + $0xc8] sm:$0xff] %v723
  %756 = vst [vmem:[%s5 + $0xd0] sm:$0xff] %v724
  %757 = vst [vmem:[%s5 + $0xd8] sm:$0xff] %v725
  %758 = vst [vmem:[%s5 + $0xe0] sm:$0xff] %v726
  %759 = vst [vmem:[%s5 + $0xe8] sm:$0xff] %v727
  %760 = vst [vmem:[%s5 + $0xf0] sm:$0xff] %v728
  %761 = vst [vmem:[%s5 + $0xf8] sm:$0xff] %v729
  %762 = vxpose.xlu0.b32.start [1/16] %v59, 128
  %763 = vxpose.xlu0.b32.cont [2/16] %v60, 128
  %764 = vxpose.xlu0.b32.cont [3/16] %v61, 128
  %765 = vxpose.xlu0.b32.cont [4/16] %v62, 128
  %766 = vxpose.xlu0.b32.cont [5/16] %v63, 128
  %767 = vxpose.xlu0.b32.cont [6/16] %v64, 128
  %768 = vxpose.xlu0.b32.cont [7/16] %v65, 128
  %769 = vxpose.xlu0.b32.cont [8/16] %v66, 128
  %770 = vxpose.xlu0.b32.cont [9/16] %v67, 128
  %771 = vxpose.xlu0.b32.cont [10/16] %v68, 128
  %772 = vxpose.xlu0.b32.cont [11/16] %v69, 128
  %773 = vxpose.xlu0.b32.cont [12/16] %v70, 128
  %774 = vxpose.xlu0.b32.cont [13/16] %v71, 128
  %775 = vxpose.xlu0.b32.cont [14/16] %v72, 128
  %776 = vxpose.xlu0.b32.cont [15/16] %v73, 128
  %777 = vxpose.xlu0.b32.end [16/16] %v74, 128
  %v778 = vpop.trf.xlu0
  %v779 = vpop.trf.xlu0
  %v780 = vpop.trf.xlu0
  %v781 = vpop.trf.xlu0
  %v782 = vpop.trf.xlu0
  %v783 = vpop.trf.xlu0
  %v784 = vpop.trf.xlu0
  %v785 = vpop.trf.xlu0
  %v786 = vpop.trf.xlu0
  %v787 = vpop.trf.xlu0
  %v788 = vpop.trf.xlu0
  %v789 = vpop.trf.xlu0
  %v790 = vpop.trf.xlu0
  %v791 = vpop.trf.xlu0
  %v792 = vpop.trf.xlu0
  %v793 = vpop.trf.xlu0
  %794 = vmatprep.subr.mxu0 0.0
  %795 = vmatpush1.msra.mxu0 %v713
  %796 = vmatprep.subr.mxu0 0.0
  %797 = vmatpush1.msra.mxu0 %v712
  %798 = vmatprep.subr.mxu0 0.0
  %799 = vmatpush1.msra.mxu0 %v711
  %800 = vmatprep.subr.mxu0 0.0
  %801 = vmatpush1.msra.mxu0 %v710
  %802 = vmatprep.subr.mxu0 0.0
  %803 = vmatpush1.msra.mxu0 %v709
  %804 = vmatprep.subr.mxu0 0.0
  %805 = vmatpush1.msra.mxu0 %v708
  %806 = vmatprep.subr.mxu0 0.0
  %807 = vmatpush1.msra.mxu0 %v707
  %808 = vmatprep.subr.mxu0 0.0
  %809 = vmatpush1.msra.mxu0 %v706
  %810 = vmatprep.subr.mxu0 0.0
  %811 = vmatpush1.msra.mxu0 %v705
  %812 = vmatprep.subr.mxu0 0.0
  %813 = vmatpush1.msra.mxu0 %v704
  %814 = vmatprep.subr.mxu0 0.0
  %815 = vmatpush1.msra.mxu0 %v703
  %816 = vmatprep.subr.mxu0 0.0
  %817 = vmatpush1.msra.mxu0 %v702
  %818 = vmatprep.subr.mxu0 0.0
  %819 = vmatpush1.msra.mxu0 %v701
  %820 = vmatprep.subr.mxu0 0.0
  %821 = vmatpush1.msra.mxu0 %v700
  %822 = vmatprep.subr.mxu0 0.0
  %823 = vmatpush1.msra.mxu0 %v699
  %824 = vmatprep.subr.mxu0 0.0
  %825 = vmatpush1.msra.mxu0 %v698
  %826 = vmatprep.subr.mxu0 0.0
  %827 = vmatpush2.msra.mxu0 0.0
  %828 = vmatprep.subr.mxu0 0.0
  %829 = vmatpush2.msra.mxu0 0.0
  %830 = vmatprep.subr.mxu0 0.0
  %831 = vmatpush2.msra.mxu0 0.0
  %832 = vmatprep.subr.mxu0 0.0
  %833 = vmatpush2.msra.mxu0 0.0
  %834 = vmatprep.subr.mxu0 0.0
  %835 = vmatpush2.msra.mxu0 0.0
  %836 = vmatprep.subr.mxu0 0.0
  %837 = vmatpush2.msra.mxu0 0.0
  %838 = vmatprep.subr.mxu0 0.0
  %839 = vmatpush2.msra.mxu0 0.0
  %840 = vmatprep.subr.mxu0 0.0
  %841 = vmatpush2.msra.mxu0 0.0
  %842 = vmatprep.subr.mxu0 0.0
  %843 = vmatpush2.msra.mxu0 0.0
  %844 = vmatprep.subr.mxu0 0.0
  %845 = vmatpush2.msra.mxu0 0.0
  %846 = vmatprep.subr.mxu0 0.0
  %847 = vmatpush2.msra.mxu0 0.0
  %848 = vmatprep.subr.mxu0 0.0
  %849 = vmatpush2.msra.mxu0 0.0
  %850 = vmatprep.subr.mxu0 0.0
  %851 = vmatpush2.msra.mxu0 0.0
  %852 = vmatprep.subr.mxu0 0.0
  %853 = vmatpush2.msra.mxu0 0.0
  %854 = vmatprep.subr.mxu0 0.0
  %855 = vmatpush2.msra.mxu0 0.0
  %856 = vmatprep.subr.mxu0 0.0
  %857 = vmatpush2.msra.mxu0 0.0
  %858 = vmatprep.mubr.f32.mxu0 0.0
  %859 = vmatmul.mubr.f32.gmra.mxu0 %v778
  %v860 = vpop.f32.mrf.mxu0
  %v861 = vadd.f32 0.0, %v860
  %v862 = vpop.f32.mrf.mxu0
  %863 = vmatprep.mubr.f32.mxu0 0.0
  %864 = vmatmul.mubr.f32.gmra.mxu0 %v779
  %v865 = vpop.f32.mrf.mxu0
  %v866 = vadd.f32 0.0, %v865
  %v867 = vpop.f32.mrf.mxu0
  %868 = vmatprep.mubr.f32.mxu0 0.0
  %869 = vmatmul.mubr.f32.gmra.mxu0 %v780
  %v870 = vpop.f32.mrf.mxu0
  %v871 = vadd.f32 0.0, %v870
  %v872 = vpop.f32.mrf.mxu0
  %873 = vmatprep.mubr.f32.mxu0 0.0
  %874 = vmatmul.mubr.f32.gmra.mxu0 %v781
  %v875 = vpop.f32.mrf.mxu0
  %v876 = vadd.f32 0.0, %v875
  %v877 = vpop.f32.mrf.mxu0
  %878 = vdwg.mxu0
  %879 = vxpose.xlu0.b32.start [1/16] %v75, 128
  %880 = vxpose.xlu0.b32.cont [2/16] %v76, 128
  %881 = vxpose.xlu0.b32.cont [3/16] %v77, 128
  %882 = vxpose.xlu0.b32.cont [4/16] %v78, 128
  %883 = vxpose.xlu0.b32.cont [5/16] %v79, 128
  %884 = vxpose.xlu0.b32.cont [6/16] %v80, 128
  %885 = vxpose.xlu0.b32.cont [7/16] %v81, 128
  %886 = vxpose.xlu0.b32.cont [8/16] %v82, 128
  %887 = vxpose.xlu0.b32.cont [9/16] %v83, 128
  %888 = vxpose.xlu0.b32.cont [10/16] %v84, 128
  %889 = vxpose.xlu0.b32.cont [11/16] %v85, 128
  %890 = vxpose.xlu0.b32.cont [12/16] %v86, 128
  %891 = vxpose.xlu0.b32.cont [13/16] %v87, 128
  %892 = vxpose.xlu0.b32.cont [14/16] %v88, 128
  %893 = vxpose.xlu0.b32.cont [15/16] %v89, 128
  %894 = vxpose.xlu0.b32.end [16/16] %v90, 128
  %v895 = vpop.trf.xlu0
  %v896 = vpop.trf.xlu0
  %v897 = vpop.trf.xlu0
  %v898 = vpop.trf.xlu0
  %v899 = vpop.trf.xlu0
  %v900 = vpop.trf.xlu0
  %v901 = vpop.trf.xlu0
  %v902 = vpop.trf.xlu0
  %v903 = vpop.trf.xlu0
  %v904 = vpop.trf.xlu0
  %v905 = vpop.trf.xlu0
  %v906 = vpop.trf.xlu0
  %v907 = vpop.trf.xlu0
  %v908 = vpop.trf.xlu0
  %v909 = vpop.trf.xlu0
  %v910 = vpop.trf.xlu0
  %911 = vmatprep.subr.mxu0 0.0
  %912 = vmatpush1.msra.mxu0 %v729
  %913 = vmatprep.subr.mxu0 0.0
  %914 = vmatpush1.msra.mxu0 %v728
  %915 = vmatprep.subr.mxu0 0.0
  %916 = vmatpush1.msra.mxu0 %v727
  %917 = vmatprep.subr.mxu0 0.0
  %918 = vmatpush1.msra.mxu0 %v726
  %919 = vmatprep.subr.mxu0 0.0
  %920 = vmatpush1.msra.mxu0 %v725
  %921 = vmatprep.subr.mxu0 0.0
  %922 = vmatpush1.msra.mxu0 %v724
  %923 = vmatprep.subr.mxu0 0.0
  %924 = vmatpush1.msra.mxu0 %v723
  %925 = vmatprep.subr.mxu0 0.0
  %926 = vmatpush1.msra.mxu0 %v722
  %927 = vmatprep.subr.mxu0 0.0
  %928 = vmatpush1.msra.mxu0 %v721
  %929 = vmatprep.subr.mxu0 0.0
  %930 = vmatpush1.msra.mxu0 %v720
  %931 = vmatprep.subr.mxu0 0.0
  %932 = vmatpush1.msra.mxu0 %v719
  %933 = vmatprep.subr.mxu0 0.0
  %934 = vmatpush1.msra.mxu0 %v718
  %935 = vmatprep.subr.mxu0 0.0
  %936 = vmatpush1.msra.mxu0 %v717
  %937 = vmatprep.subr.mxu0 0.0
  %938 = vmatpush1.msra.mxu0 %v716
  %939 = vmatprep.subr.mxu0 0.0
  %940 = vmatpush1.msra.mxu0 %v715
  %941 = vmatprep.subr.mxu0 0.0
  %942 = vmatpush1.msra.mxu0 %v714
  %943 = vmatprep.subr.mxu0 0.0
  %944 = vmatpush2.msra.mxu0 0.0
  %945 = vmatprep.subr.mxu0 0.0
  %946 = vmatpush2.msra.mxu0 0.0
  %947 = vmatprep.subr.mxu0 0.0
  %948 = vmatpush2.msra.mxu0 0.0
  %949 = vmatprep.subr.mxu0 0.0
  %950 = vmatpush2.msra.mxu0 0.0
  %951 = vmatprep.subr.mxu0 0.0
  %952 = vmatpush2.msra.mxu0 0.0
  %953 = vmatprep.subr.mxu0 0.0
  %954 = vmatpush2.msra.mxu0 0.0
  %955 = vmatprep.subr.mxu0 0.0
  %956 = vmatpush2.msra.mxu0 0.0
  %957 = vmatprep.subr.mxu0 0.0
  %958 = vmatpush2.msra.mxu0 0.0
  %959 = vmatprep.subr.mxu0 0.0
  %960 = vmatpush2.msra.mxu0 0.0
  %961 = vmatprep.subr.mxu0 0.0
  %962 = vmatpush2.msra.mxu0 0.0
  %963 = vmatprep.subr.mxu0 0.0
  %964 = vmatpush2.msra.mxu0 0.0
  %965 = vmatprep.subr.mxu0 0.0
  %966 = vmatpush2.msra.mxu0 0.0
  %967 = vmatprep.subr.mxu0 0.0
  %968 = vmatpush2.msra.mxu0 0.0
  %969 = vmatprep.subr.mxu0 0.0
  %970 = vmatpush2.msra.mxu0 0.0
  %971 = vmatprep.subr.mxu0 0.0
  %972 = vmatpush2.msra.mxu0 0.0
  %973 = vmatprep.subr.mxu0 0.0
  %974 = vmatpush2.msra.mxu0 0.0
  %975 = vmatprep.mubr.f32.mxu0 0.0
  %976 = vmatmul.mubr.f32.gmra.mxu0 %v895
  %v977 = vpop.f32.mrf.mxu0
  %v978 = vadd.f32 0.0, %v977
  %v979 = vpop.f32.mrf.mxu0
  %980 = vmatprep.mubr.f32.mxu0 0.0
  %981 = vmatmul.mubr.f32.gmra.mxu0 %v896
  %v982 = vpop.f32.mrf.mxu0
  %v983 = vadd.f32 0.0, %v982
  %v984 = vpop.f32.mrf.mxu0
  %985 = vmatprep.mubr.f32.mxu0 0.0
  %986 = vmatmul.mubr.f32.gmra.mxu0 %v897
  %v987 = vpop.f32.mrf.mxu0
  %v988 = vadd.f32 0.0, %v987
  %v989 = vpop.f32.mrf.mxu0
  %990 = vmatprep.mubr.f32.mxu0 0.0
  %991 = vmatmul.mubr.f32.gmra.mxu0 %v898
  %v992 = vpop.f32.mrf.mxu0
  %v993 = vadd.f32 0.0, %v992
  %v994 = vpop.f32.mrf.mxu0
  %995 = vdwg.mxu0
  %996 = vst [vmem:[%s4] sm:$0xff] %v861
  %997 = vst [vmem:[%s4 + $0x8] sm:$0xff] %v866
  %998 = vst [vmem:[%s4 + $0x10] sm:$0xff] %v871
  %999 = vst [vmem:[%s4 + $0x18] sm:$0xff] %v876
  %1000 = vst [vmem:[%s4 + $0x40] sm:$0xff] %v978
  %1001 = vst [vmem:[%s4 + $0x48] sm:$0xff] %v983
  %1002 = vst [vmem:[%s4 + $0x50] sm:$0xff] %v988
  %1003 = vst [vmem:[%s4 + $0x58] sm:$0xff] %v993
  %v1004 = vld [vmem:[%s3] sm:$0xff]
  %v1005 = vld [vmem:[%s3 + $0x8] sm:$0xff]
  %v1006 = vld [vmem:[%s3 + $0x10] sm:$0xff]
  %v1007 = vld [vmem:[%s3 + $0x18] sm:$0xff]
  %v1008 = vld [vmem:[%s3 + $0x20] sm:$0xff]
  %v1009 = vld [vmem:[%s3 + $0x28] sm:$0xff]
  %v1010 = vld [vmem:[%s3 + $0x30] sm:$0xff]
  %v1011 = vld [vmem:[%s3 + $0x38] sm:$0xff]
  %1012 = vst [vmem:[%s4 + $0x20] sm:$0xff] %v1004
  %1013 = vst [vmem:[%s4 + $0x28] sm:$0xff] %v1005
  %1014 = vst [vmem:[%s4 + $0x30] sm:$0xff] %v1006
  %1015 = vst [vmem:[%s4 + $0x38] sm:$0xff] %v1007
  %1016 = vst [vmem:[%s4 + $0x60] sm:$0xff] %v1008
  %1017 = vst [vmem:[%s4 + $0x68] sm:$0xff] %v1009
  %1018 = vst [vmem:[%s4 + $0x70] sm:$0xff] %v1010
  %1019 = vst [vmem:[%s4 + $0x78] sm:$0xff] %v1011
  // Predicated region
  $region18: #{memory_forward.1} parent=0 // pred_check
    _
  $region19: #{memory_forward.1} parent=0 // pred_check_branch
    %1021 = sbr.rel (0) target = $region21
  $region20: #{memory_forward.1} parent=0 // pred_region
    _
  $region21: #{memory_forward.1} parent=0 // pred_fallthru
    _
  // Predicated region
  $region22: #{memory_forward.1} parent=0 // pred_check
    _
  $region23: #{memory_forward.1} parent=0 // pred_check_branch
    %1023 = sbr.rel (0) target = $region25
  $region24: #{memory_forward.1} parent=0 // pred_region
    _
  $region25: #{memory_forward.1} parent=0 // pred_fallthru
    _
  // Predicated region
  $region26: #{memory_forward.1} parent=0 // pred_check
    _
  $region27: #{memory_forward.1} parent=0 // pred_check_branch
    %1025 = sbr.rel (0) target = $region29
  $region28: #{memory_forward.1} parent=0 // pred_region
    _
  $region29: #{memory_forward.1} parent=0 // pred_fallthru
    _
  // Predicated region
  $region30: #{memory_forward.1} parent=0 // pred_check
    _
  $region31: #{memory_forward.1} parent=0 // pred_check_branch
    %1027 = sbr.rel (0) target = $region33
  $region32: #{memory_forward.1} parent=0 // pred_region
    _
  $region33: #{memory_forward.1} parent=0 // pred_fallthru
    _

</llo_original>
